<compile_context>
chip_gen: v5e
topology: v5e:2x2
jax: 0.10.0
libtpu: 0.0.40
codegen_flags: <defaults>
</compile_context>

<pallas_src>
import jax
import jax.numpy as jnp
from jax.experimental import pallas as pl
from jax.experimental.pallas import tpu as pltpu

_LANE = 128
_SUBLANE = 8


def _flatten_pad_f32(a):
    """Flatten to 1-D, zero-pad to a multiple of 8*128, reshape to (rows, 128)."""
    flat = a.astype(jnp.float32).reshape(-1)
    n = flat.shape[0]
    chunk = _LANE * _SUBLANE
    n_pad = (-n) % chunk
    if n_pad:
        flat = jnp.pad(flat, (0, n_pad))
    return flat.reshape(-1, _LANE)


def _make_kernels(thresholds, balancing_weights, scale, n_valid):
    """Build kernels with hyperparameters baked in as compile-time constants."""
    bw = [float(b) for b in balancing_weights]
    thr = [float(t) for t in thresholds]
    inv_n_scale = float(scale) / float(n_valid)

    def _weights(t):
        w = jnp.full_like(t, bw[0])
        for i, th in enumerate(thr):
            w = w + (bw[i + 1] - bw[i]) * (t >= th).astype(t.dtype)
        return w

    def wmse_kernel(x_ref, t_ref, o_ref):
        x = x_ref[...]                       # (rows, 128) f32
        t = t_ref[...]
        d = x - t
        se = _weights(t) * d * d
        o_ref[...] = jnp.sum(se, keepdims=True) * inv_n_scale   # (1, 1)

    def wmse_mask_kernel(x_ref, t_ref, m_ref, o_ref):
        x = x_ref[...]
        t = t_ref[...]
        d = x - t
        se = (_weights(t) * m_ref[...]) * d * d
        o_ref[...] = jnp.sum(se, keepdims=True) * inv_n_scale

    return wmse_kernel, wmse_mask_kernel


def weighted_mse(inp, target, mask=None,
                 thresholds=(30, 40, 50),
                 balancing_weights=(1, 5, 10, 30),
                 normal_loss_global_scale=1.0):
    """Weighted MSE loss matching PyTorch `Weighted_mse.forward`. Returns a scalar."""
    assert inp.shape == target.shape
    n_valid = int(inp.size)                  # mean is over ALL elements (PyTorch semantics)

    x2d = _flatten_pad_f32(inp)
    t2d = _flatten_pad_f32(target)

    kern, kern_mask = _make_kernels(thresholds, balancing_weights,
                                    normal_loss_global_scale, n_valid)

    vmem_spec = pl.BlockSpec(memory_space=pltpu.MemorySpace.VMEM)
    out_shape = jax.ShapeDtypeStruct((1, 1), jnp.float32)

    if mask is None:
        out = pl.pallas_call(
            kern,
            out_shape=out_shape,
            in_specs=[vmem_spec, vmem_spec],
            out_specs=vmem_spec,
        )(x2d, t2d)
    else:
        assert mask.shape == inp.shape
        m2d = _flatten_pad_f32(mask)
        out = pl.pallas_call(
            kern_mask,
            out_shape=out_shape,
            in_specs=[vmem_spec, vmem_spec, vmem_spec],
            out_specs=vmem_spec,
        )(x2d, t2d, m2d)

    return out[0, 0]


def reference_weighted_mse(inp, target, mask=None,
                           thresholds=(30, 40, 50),
                           balancing_weights=(1, 5, 10, 30),
                           normal_loss_global_scale=1.0):
    """Pure-JAX reference (direct transcription of the PyTorch forward)."""
    inp = inp.astype(jnp.float32)
    target = target.astype(jnp.float32)
    w = jnp.full_like(inp, float(balancing_weights[0]))
    for i, th in enumerate(thresholds):
        w = w + (balancing_weights[i + 1] - balancing_weights[i]) * \
            (target >= th).astype(jnp.float32)
    if mask is not None:
        w = w * mask.astype(jnp.float32)
    return normal_loss_global_scale * jnp.mean(w * (inp - target) ** 2)


if __name__ == "__main__":
    key = jax.random.PRNGKey(0)
    k1, k2, k3 = jax.random.split(key, 3)

    N, C, H, W = 2, 4, 16, 16
    # target spans the thresholds [30, 40, 50] so every weight band is exercised
    target = jax.random.uniform(k1, (N, C, H, W), jnp.float32, 0.0, 60.0)
    inp = target + 3.0 * jax.random.normal(k2, (N, C, H, W), jnp.float32)
    mask = (jax.random.uniform(k3, (N, C, H, W), jnp.float32) > 0.3).astype(jnp.float32)

    # no-mask path (default forward)
    out = jax.block_until_ready(weighted_mse(inp, target))
    ref = jax.block_until_ready(reference_weighted_mse(inp, target))
    assert jnp.allclose(out, ref, rtol=1e-4, atol=1e-4), (float(out), float(ref))

    # masked path
    out_m = jax.block_until_ready(weighted_mse(inp, target, mask))
    ref_m = jax.block_until_ready(reference_weighted_mse(inp, target, mask))
    assert jnp.allclose(out_m, ref_m, rtol=1e-4, atol=1e-4), (float(out_m), float(ref_m))

    print("KERNEL_OK")
</pallas_src>

<mosaic_0001>
module attributes {stable_mosaic.version = 11 : i64} {
  func.func @wmse_kernel(%arg0: memref<16x128xf32, #tpu.memory_space<vmem>>, %arg1: memref<16x128xf32, #tpu.memory_space<vmem>>, %arg2: memref<1x1xf32, #tpu.memory_space<vmem>>) attributes {dimension_semantics = [], scalar_prefetch = 0 : i64, scratch_operands = 0 : i64, tpu.core_type = #tpu.core_type<tc>} {
    %c0 = arith.constant 0 : index
    %c0_0 = arith.constant 0 : index
    %0 = vector.load %arg0[%c0, %c0_0] : memref<16x128xf32, #tpu.memory_space<vmem>>, vector<16x128xf32>
    %c0_1 = arith.constant 0 : index
    %c0_2 = arith.constant 0 : index
    %1 = vector.load %arg1[%c0_1, %c0_2] : memref<16x128xf32, #tpu.memory_space<vmem>>, vector<16x128xf32>
    %2 = arith.subf %0, %1 : vector<16x128xf32>
    %cst = arith.constant 1.000000e+00 : f32
    %3 = vector.broadcast %cst : f32 to vector<16x128xf32>
    %cst_3 = arith.constant 3.000000e+01 : f32
    %4 = vector.broadcast %cst_3 : f32 to vector<16x128xf32>
    %5 = arith.cmpf oge, %1, %4 : vector<16x128xf32>
    %6 = arith.extui %5 : vector<16x128xi1> to vector<16x128xi32>
    %7 = arith.sitofp %6 : vector<16x128xi32> to vector<16x128xf32>
    %cst_4 = arith.constant 4.000000e+00 : f32
    %8 = vector.broadcast %cst_4 : f32 to vector<16x128xf32>
    %9 = arith.mulf %8, %7 : vector<16x128xf32>
    %10 = arith.addf %3, %9 : vector<16x128xf32>
    %cst_5 = arith.constant 4.000000e+01 : f32
    %11 = vector.broadcast %cst_5 : f32 to vector<16x128xf32>
    %12 = arith.cmpf oge, %1, %11 : vector<16x128xf32>
    %13 = arith.extui %12 : vector<16x128xi1> to vector<16x128xi32>
    %14 = arith.sitofp %13 : vector<16x128xi32> to vector<16x128xf32>
    %cst_6 = arith.constant 5.000000e+00 : f32
    %15 = vector.broadcast %cst_6 : f32 to vector<16x128xf32>
    %16 = arith.mulf %15, %14 : vector<16x128xf32>
    %17 = arith.addf %10, %16 : vector<16x128xf32>
    %cst_7 = arith.constant 5.000000e+01 : f32
    %18 = vector.broadcast %cst_7 : f32 to vector<16x128xf32>
    %19 = arith.cmpf oge, %1, %18 : vector<16x128xf32>
    %20 = arith.extui %19 : vector<16x128xi1> to vector<16x128xi32>
    %21 = arith.sitofp %20 : vector<16x128xi32> to vector<16x128xf32>
    %cst_8 = arith.constant 2.000000e+01 : f32
    %22 = vector.broadcast %cst_8 : f32 to vector<16x128xf32>
    %23 = arith.mulf %22, %21 : vector<16x128xf32>
    %24 = arith.addf %17, %23 : vector<16x128xf32>
    %25 = arith.mulf %24, %2 : vector<16x128xf32>
    %26 = arith.mulf %25, %2 : vector<16x128xf32>
    %27 = vector.shape_cast %26 : vector<16x128xf32> to vector<1x16x128xf32>
    %cst_9 = arith.constant dense<0.000000e+00> : vector<1xf32>
    %28 = vector.multi_reduction <add>, %27, %cst_9 [1, 2] : vector<1x16x128xf32> to vector<1xf32>
    %29 = vector.shape_cast %28 : vector<1xf32> to vector<1x1x1xf32>
    %30 = vector.extract %29[0, 0, 0] : f32 from vector<1x1x1xf32>
    %31 = vector.broadcast %30 : f32 to vector<1x1xf32>
    %cst_10 = arith.constant 4.8828125E-4 : f32
    %32 = vector.broadcast %cst_10 : f32 to vector<1x1xf32>
    %33 = arith.mulf %31, %32 : vector<1x1xf32>
    %c0_11 = arith.constant 0 : index
    %c0_12 = arith.constant 0 : index
    %34 = vector.load %arg2[%c0_11, %c0_12] : memref<1x1xf32, #tpu.memory_space<vmem>>, vector<1x1xf32>
    tpu.vector_store %arg2[%c0_11, %c0_12], %33 {strides = array<i32>} : memref<1x1xf32, #tpu.memory_space<vmem>>, vector<1x1xf32>,
    return
  }
}

</mosaic_0001>

<llo_original>
// kernel: tpu_custom_call.1
$region0: #{tpu_custom_call.1}
  #allocation0 [shape = 'u32[]', space=smem, size = 0x4, offset = 0x4, fixed_abs, tag = 'smem constant byte address 0x4 - core index']
  #allocation1 [shape = 'u32[72,128]{1,0:T(1,128)}', space=vmem, size = 0x9000, scoped, tag = 'internal scratch']
  %s0 = inlined_call_operand.hbm [shape: f32[16,128], index: 0, kind: input, shape index: {}]
  %s1 = inlined_call_operand.hbm [shape: f32[16,128], index: 1, kind: input, shape index: {}]
  %s2 = inlined_call_operand.hbm [shape: f32[1,1], index: 2, kind: output, shape index: {}]
  %s3 = sld [smem:[#allocation0]]
  $region26: #{tpu_custom_call.1} parent=0
    _
  %s5 = ssub.s32 1, %s3
  %s6 = scalar_select 0, %s5, %s3
  $region1: #{tpu_custom_call.1} parent=0
    #allocation2 [shape = 'u8[8192]{0}', space=vmem, size = 0x2000, scoped, tag = 'input window, operand 0, single buffered']
    #allocation3 [shape = 's32[1]{0}', space=sflag, size = 0x4, scoped, tag = 'scoped memory for tpu_custom_call.1']
    #allocation4 [shape = 's32[1]{0}', space=sflag, size = 0x4, scoped, tag = 'scoped memory for tpu_custom_call.1']
    #allocation5 [shape = 'u8[8192]{0}', space=vmem, size = 0x2000, scoped, tag = 'input window, operand 1, single buffered']
    #allocation6 [shape = 's32[1]{0}', space=sflag, size = 0x4, scoped, tag = 'scoped memory for tpu_custom_call.1']
    #allocation7 [shape = 'u8[512]{0}', space=vmem, size = 0x400, scoped, tag = 'output window, operand 0, single buffered']
    %7 = vsyncpa [#allocation3], 0
    %8 = vsyncpa [#allocation6], 0
    %9 = vsyncpa [#allocation4], 0
    // Predicated region
    $region2: #{tpu_custom_call.1} parent=1 // pred_check
      _
    $region3: #{tpu_custom_call.1} parent=1 // pred_check_branch
      %11 = sbr.rel (0) target = $region5
    $region4: #{tpu_custom_call.1} parent=1 // pred_region
      %13 = vsyncadd [#allocation3], 0
      %s14 = sshll.u32 %s0, 4
      %s15 = int_to_ptr.hbm [resolvable:$true] %s14
      %s16 = sshll.u32 [#allocation2], 4
      %s17 = int_to_ptr.vmem [resolvable:$true] %s16
      %22 = dma.hbm_to_vmem [thread:$0]  %s15, 256, %s17, [#allocation3], 128, 128, 8
    $region5: #{tpu_custom_call.1} parent=1 // pred_fallthru
      _
    // Predicated region
    $region6: #{tpu_custom_call.1} parent=1 // pred_check
      _
    $region7: #{tpu_custom_call.1} parent=1 // pred_check_branch
      %24 = sbr.rel (0) target = $region9
    $region8: #{tpu_custom_call.1} parent=1 // pred_region
      %26 = vsyncadd [#allocation6], 0
      %s27 = sshll.u32 %s1, 4
      %s28 = int_to_ptr.hbm [resolvable:$true] %s27
      %s29 = sshll.u32 [#allocation5], 4
      %s30 = int_to_ptr.vmem [resolvable:$true] %s29
      %35 = dma.hbm_to_vmem [thread:$0]  %s28, 256, %s30, [#allocation6], 128, 128, 8
    $region9: #{tpu_custom_call.1} parent=1 // pred_fallthru
      _
    // Predicated region
    $region10: #{tpu_custom_call.1} parent=1 // pred_check
      _
    $region11: #{tpu_custom_call.1} parent=1 // pred_check_branch
      %37 = sbr.rel (0) target = $region13
    $region12: #{tpu_custom_call.1} parent=1 // pred_region
      %39 = dma.done [#allocation3], 256
    $region13: #{tpu_custom_call.1} parent=1 // pred_fallthru
      _
    // Predicated region
    $region14: #{tpu_custom_call.1} parent=1 // pred_check
      _
    $region15: #{tpu_custom_call.1} parent=1 // pred_check_branch
      %41 = sbr.rel (0) target = $region17
    $region16: #{tpu_custom_call.1} parent=1 // pred_region
      %43 = dma.done [#allocation6], 256
    $region17: #{tpu_custom_call.1} parent=1 // pred_fallthru
      _
    %v44 = vld [vmem:[#allocation2] sm:$0xff]
    %v45 = vld [vmem:[#allocation2 + $0x8] sm:$0xff]
    %v46 = vld [vmem:[#allocation5] sm:$0xff]
    %v47 = vld [vmem:[#allocation5 + $0x8] sm:$0xff]
    %v48 = vsub.f32 %v44, %v46
    %v49 = vsub.f32 %v45, %v47
    %vm50 = vcmp.ge.f32.partialorder %v46, 30.0
    %vm51 = vcmp.ge.f32.partialorder %v47, 30.0
    %v52 = vsel %vm50, 1, 0
    %v53 = vsel %vm51, 1, 0
    %v54 = vcvt.s32.f32 %v52
    %v55 = vcvt.s32.f32 %v53
    %v56 = vmul.f32 %v54, 4.0
    %v57 = vmul.f32 %v55, 4.0
    %v58 = vadd.f32 %v56, 1.0
    %v59 = vadd.f32 %v57, 1.0
    %vm60 = vcmp.ge.f32.partialorder %v46, 40.0
    %vm61 = vcmp.ge.f32.partialorder %v47, 40.0
    %v62 = vsel %vm60, 1, 0
    %v63 = vsel %vm61, 1, 0
    %v64 = vcvt.s32.f32 %v62
    %v65 = vcvt.s32.f32 %v63
    %v66 = vmul.f32 %v64, 5.0
    %v67 = vmul.f32 %v65, 5.0
    %v68 = vadd.f32 %v58, %v66
    %v69 = vadd.f32 %v59, %v67
    %vm70 = vcmp.ge.f32.partialorder %v46, 50.0
    %vm71 = vcmp.ge.f32.partialorder %v47, 50.0
    %v72 = vsel %vm70, 1, 0
    %v73 = vsel %vm71, 1, 0
    %v74 = vcvt.s32.f32 %v72
    %v75 = vcvt.s32.f32 %v73
    %v76 = vmul.f32 %v74, 20.0
    %v77 = vmul.f32 %v75, 20.0
    %v78 = vadd.f32 %v68, %v76
    %v79 = vadd.f32 %v69, %v77
    %v80 = vmul.f32 %v78, %v48
    %v81 = vmul.f32 %v79, %v49
    %v82 = vmul.f32 %v80, %v48
    %v83 = vmul.f32 %v81, %v49
    %v84 = vadd.f32 %v82, %v83
    %85 = vadd.xlane.f32.xlu0 %v84
    %v86 = vpop.xlane.xlu0 %85
    %v87 = vrot.slane %v86, 4
    %v88 = vadd.f32 %v86, %v87
    %v89 = vrot.slane %v88, 2
    %v90 = vadd.f32 %v88, %v89
    %v91 = vrot.slane %v90, 1
    %v92 = vadd.f32 %v90, %v91
    %s93 = vtos %v92
    %v94 = vstv %s93
    %v95 = vmul.f32 %v94, 0.00048828125
    %vm96 = vcmask 0
    %97 = vst.msk [vmem:[#allocation7] sm:$0x1] %vm96, %v95
    // Predicated region
    $region18: #{tpu_custom_call.1} parent=1 // pred_check
      _
    $region19: #{tpu_custom_call.1} parent=1 // pred_check_branch
      %99 = sbr.rel (0) target = $region21
    $region20: #{tpu_custom_call.1} parent=1 // pred_region
      %101 = vsyncadd [#allocation4], 0
      %s103 = sshll.u32 [#allocation7], 4
      %s104 = int_to_ptr.vmem [resolvable:$true] %s103
      %s105 = sshll.u32 %s2, 4
      %s106 = int_to_ptr.hbm [resolvable:$true] %s105
      %108 = dma.vmem_to_hbm [thread:$0]  %s104, 16, %s106, [#allocation4]
    $region21: #{tpu_custom_call.1} parent=1 // pred_fallthru
      _
    // Predicated region
    $region22: #{tpu_custom_call.1} parent=1 // pred_check
      _
    $region23: #{tpu_custom_call.1} parent=1 // pred_check_branch
      %110 = sbr.rel (0) target = $region25
    $region24: #{tpu_custom_call.1} parent=1 // pred_region
      %112 = dma.done [#allocation4], 16
    $region25: #{tpu_custom_call.1} parent=1 // pred_fallthru
      _
    %113 = vsyncpa [#allocation3], 1
    %114 = vsyncpa [#allocation6], 1
    %115 = vsyncpa [#allocation4], 1

</llo_original>
